<compile_context>
chip_gen: v7x
topology: tpu7x:2x2x1
jax: 0.10.0
libtpu: 0.0.40
codegen_flags: <defaults>
</compile_context>

<pallas_src>
import functools
import math

import jax
import jax.numpy as jnp
from jax.experimental import pallas as pl
from jax.experimental.pallas import tpu as pltpu


def _am_loss_kernel(logits_ref, labels_ref, out_ref, *, scale, margin_factor):
    """One batch tile per grid step; writes per-row -log(a/b + eps)."""
    logits = logits_ref[...].astype(jnp.float32)          # (tile_n, C)
    labels = labels_ref[...]                               # (tile_n, 1) int32

    tile_n, c = logits.shape
    class_ids = jax.lax.broadcasted_iota(jnp.int32, (tile_n, c), 1)
    is_target = class_ids == labels                        # (tile_n, C)

    # single transcendental pass over the tile
    exp_cos = jnp.exp(scale * logits)                      # exp(s * cos)

    exp_tgt = jnp.sum(jnp.where(is_target, exp_cos, 0.0),
                      axis=1, keepdims=True)               # exp(s*cos_target)
    sum_all = jnp.sum(exp_cos, axis=1, keepdims=True)

    a = exp_tgt * margin_factor                            # exp(s*(cos_t - m))
    sum_c = sum_all - exp_tgt                              # sum over non-target
    b = a + sum_c

    out_ref[...] = -jnp.log(a / b + 1e-20)                 # (tile_n, 1)


def additive_margin_loss(logits, labels, scale, margin, lmd=1.0,
                         *, block_budget_bytes=32 * 1024 * 1024):
    """logits: (N, C) float, labels: (N,) int class indices. Returns scalar loss."""
    n, c = logits.shape
    logits = logits.astype(jnp.float32)
    labels = labels.astype(jnp.int32).reshape(n, 1)

    # --- tile sizing: largest multiple-of-8 row tile fitting the VMEM budget
    # (double-buffered logits + labels + output blocks), capped at the batch.
    bytes_per_row = (c + 2) * 4
    max_rows = max(8, (block_budget_bytes // (2 * bytes_per_row)) // 8 * 8)
    n_pad8 = ((n + 7) // 8) * 8
    tile_n = min(max_rows, n_pad8)
    n_padded = ((n + tile_n - 1) // tile_n) * tile_n

    pad = n_padded - n
    if pad:
        # zero-padded rows are finite (exp(0)=1) and are dropped in the wrapper.
        logits = jnp.pad(logits, ((0, pad), (0, 0)))
        labels = jnp.pad(labels, ((0, pad), (0, 0)))

    grid = (n_padded // tile_n,)

    kernel = functools.partial(
        _am_loss_kernel,
        scale=float(scale),
        margin_factor=math.exp(-float(scale) * float(margin)),
    )

    neg_log = pl.pallas_call(
        kernel,
        out_shape=jax.ShapeDtypeStruct((n_padded, 1), jnp.float32),
        grid_spec=pltpu.PrefetchScalarGridSpec(
            num_scalar_prefetch=0,
            grid=grid,
            in_specs=[
                pl.BlockSpec((tile_n, c), lambda i: (i, 0)),
                pl.BlockSpec((tile_n, 1), lambda i: (i, 0)),
            ],
            out_specs=pl.BlockSpec((tile_n, 1), lambda i: (i, 0)),
        ),
        compiler_params=pltpu.CompilerParams(
            dimension_semantics=("parallel",),          # no carried state -> megacore-safe
            vmem_limit_bytes=48 * 1024 * 1024,          # fits v5e/v6e/v7x scoped VMEM
        ),
    )(logits, labels)

    # tiny final reduction (N floats) in plain JAX
    return lmd * (jnp.sum(neg_log[:n, 0]) / jnp.float32(n))


def additive_margin_loss_from_onehot(logits, y, scale, margin, lmd=1.0):
    """Same signature as the PyTorch module (one-hot y)."""
    labels = jnp.argmax(y, axis=1)
    return additive_margin_loss(logits, labels, scale, margin, lmd)


def additive_margin_loss_ref(logits, y, scale, margin, lmd=1.0):
    """Pure-JAX reference matching the PyTorch module exactly."""
    y = y.astype(jnp.float32)
    xi = logits - margin
    a = jnp.sum(jnp.exp(scale * xi) * y, axis=1, keepdims=True)
    sum_c = jnp.sum((1.0 - y) * jnp.exp(scale * logits), axis=1, keepdims=True)
    b = a + sum_c
    return lmd * (-jnp.mean(jnp.log(a / b + 1e-20)))


if __name__ == "__main__":
    # AdditiveMarginLoss(scale, margin) hyperparameters (no learned weights).
    scale = 30.0
    margin = 0.35
    lmd = 1.0

    N, C = 16, 128  # batch, num classes
    key = jax.random.PRNGKey(0)
    k_logit, k_label = jax.random.split(key)

    # logits are cosine similarities in [-1, 1]
    logits = jax.random.uniform(k_logit, (N, C), jnp.float32, minval=-1.0, maxval=1.0)
    labels = jax.random.randint(k_label, (N,), 0, C)
    y = jax.nn.one_hot(labels, C, dtype=jnp.float32)

    loss = additive_margin_loss(logits, labels, scale, margin, lmd)
    loss = jax.block_until_ready(loss)
    ref = additive_margin_loss_ref(logits, y, scale, margin, lmd)
    assert jnp.allclose(loss, ref, rtol=1e-5, atol=1e-5), (loss, ref)

    # one-hot entry point (module-compatible signature)
    loss_oh = jax.block_until_ready(
        additive_margin_loss_from_onehot(logits, y, scale, margin, lmd))
    assert jnp.allclose(loss_oh, ref, rtol=1e-5, atol=1e-5), (loss_oh, ref)

    # ragged batch (exercises row padding path)
    N2 = 13
    logits2 = logits[:N2]
    labels2 = labels[:N2]
    y2 = y[:N2]
    loss2 = jax.block_until_ready(
        additive_margin_loss(logits2, labels2, scale, margin, lmd))
    ref2 = additive_margin_loss_ref(logits2, y2, scale, margin, lmd)
    assert jnp.allclose(loss2, ref2, rtol=1e-5, atol=1e-5), (loss2, ref2)

    print("KERNEL_OK")
</pallas_src>

<mosaic_0001>
module attributes {stable_mosaic.version = 11 : i64} {
  func.func @_am_loss_kernel(%arg0: i32, %arg1: memref<16x128xf32, #tpu.memory_space<vmem>>, %arg2: memref<16x1xi32, #tpu.memory_space<vmem>>, %arg3: memref<16x1xf32, #tpu.memory_space<vmem>>) attributes {dimension_semantics = [#tpu.dimension_semantics<parallel>], iteration_bounds = array<i64: 1>, scalar_prefetch = 0 : i64, scratch_operands = 0 : i64, tpu.core_type = #tpu.core_type<tc>, window_params = [{transform_indices = @transform_0, window_bounds = array<i64: 16, 128>}, {transform_indices = @transform_1, window_bounds = array<i64: 16, 1>}, {transform_indices = @transform_2, window_bounds = array<i64: 16, 1>}]} {
    %c0 = arith.constant 0 : index
    %c0_0 = arith.constant 0 : index
    %0 = vector.load %arg1[%c0, %c0_0] : memref<16x128xf32, #tpu.memory_space<vmem>>, vector<16x128xf32>
    %c0_1 = arith.constant 0 : index
    %c0_2 = arith.constant 0 : index
    %1 = vector.load %arg2[%c0_1, %c0_2] : memref<16x1xi32, #tpu.memory_space<vmem>>, vector<16x1xi32>
    %2 = tpu.iota {dimensions = array<i32: 1>} : vector<16x128xi32>
    %3 = vector.broadcast %1 : vector<16x1xi32> to vector<16x128xi32>
    %4 = arith.cmpi eq, %2, %3 : vector<16x128xi32>
    %cst = arith.constant 3.000000e+01 : f32
    %5 = vector.broadcast %cst : f32 to vector<16x128xf32>
    %6 = arith.mulf %5, %0 : vector<16x128xf32>
    %7 = math.exp %6 : vector<16x128xf32>
    %cst_3 = arith.constant 0.000000e+00 : f32
    %8 = vector.broadcast %cst_3 : f32 to vector<16x128xf32>
    %9 = arith.select %4, %7, %8 : vector<16x128xi1>, vector<16x128xf32>
    %cst_4 = arith.constant dense<0.000000e+00> : vector<16xf32>
    %10 = vector.multi_reduction <add>, %9, %cst_4 [1] : vector<16x128xf32> to vector<16xf32>
    %11 = vector.shape_cast %10 : vector<16xf32> to vector<16x1xf32>
    %cst_5 = arith.constant dense<0.000000e+00> : vector<16xf32>
    %12 = vector.multi_reduction <add>, %7, %cst_5 [1] : vector<16x128xf32> to vector<16xf32>
    %13 = vector.shape_cast %12 : vector<16xf32> to vector<16x1xf32>
    %cst_6 = arith.constant 2.75364491E-5 : f32
    %14 = vector.broadcast %cst_6 : f32 to vector<16x1xf32>
    %15 = arith.mulf %11, %14 : vector<16x1xf32>
    %16 = arith.subf %13, %11 : vector<16x1xf32>
    %17 = arith.addf %15, %16 : vector<16x1xf32>
    %18 = arith.divf %15, %17 : vector<16x1xf32>
    %cst_7 = arith.constant 9.99999968E-21 : f32
    %19 = vector.broadcast %cst_7 : f32 to vector<16x1xf32>
    %20 = arith.addf %18, %19 : vector<16x1xf32>
    %21 = math.log %20 : vector<16x1xf32>
    %cst_8 = arith.constant 0.000000e+00 : f32
    %22 = vector.broadcast %cst_8 : f32 to vector<16x1xf32>
    %23 = arith.subf %22, %21 : vector<16x1xf32>
    %c0_9 = arith.constant 0 : index
    %c0_10 = arith.constant 0 : index
    %24 = vector.load %arg3[%c0_9, %c0_10] : memref<16x1xf32, #tpu.memory_space<vmem>>, vector<16x1xf32>
    tpu.vector_store %arg3[%c0_9, %c0_10], %23 {strides = array<i32>} : memref<16x1xf32, #tpu.memory_space<vmem>>, vector<16x1xf32>,
    return
  }
  func.func @transform_0(%arg0: i32) -> (i32, i32) {
    %c0_i32 = arith.constant 0 : i32
    %c0_i32_0 = arith.constant 0 : i32
    return %arg0, %c0_i32 : i32, i32
  }
  func.func @transform_1(%arg0: i32) -> (i32, i32) {
    %c0_i32 = arith.constant 0 : i32
    %c0_i32_0 = arith.constant 0 : i32
    return %arg0, %c0_i32 : i32, i32
  }
  func.func @transform_2(%arg0: i32) -> (i32, i32) {
    %c0_i32 = arith.constant 0 : i32
    %c0_i32_0 = arith.constant 0 : i32
    return %arg0, %c0_i32 : i32, i32
  }
}

</mosaic_0001>

<llo_original>
// kernel: tpu_custom_call.1
$region0: #{tpu_custom_call.1}
  #allocation0 [shape = 'u32[]', space=smem, size = 0x4, offset = 0x4, fixed_abs, tag = 'smem constant byte address 0x4 - core index']
  #allocation1 [shape = 'u32[144,128]{1,0:T(1,128)}', space=vmem, size = 0x12000, scoped, tag = 'internal scratch']
  %s0 = inlined_call_operand.vmem [shape: f32[16,128], index: 0, kind: input, shape index: {}]
  %s1 = inlined_call_operand.vmem [shape: s32[16,1], index: 1, kind: input, shape index: {}]
  %s2 = inlined_call_operand.vmem [shape: f32[16,1], index: 2, kind: output, shape index: {}]
  %s3 = sld [smem:[#allocation0]]
  $region18: #{tpu_custom_call.1} parent=0
    _
  %s5 = ssub.s32 1, %s3
  %s6 = scalar_select 0, %s5, %s3
  // Predicated region
  $region2: #{tpu_custom_call.1} parent=0 // pred_check
    _
  $region3: #{tpu_custom_call.1} parent=0 // pred_check_branch
    %8 = sbr.rel (0) target = $region5
  $region4: #{tpu_custom_call.1} parent=0 // pred_region
    _
  $region5: #{tpu_custom_call.1} parent=0 // pred_fallthru
    _
  // Predicated region
  $region6: #{tpu_custom_call.1} parent=0 // pred_check
    _
  $region7: #{tpu_custom_call.1} parent=0 // pred_check_branch
    %10 = sbr.rel (0) target = $region9
  $region8: #{tpu_custom_call.1} parent=0 // pred_region
    _
  $region9: #{tpu_custom_call.1} parent=0 // pred_fallthru
    _
  %v11 = vld [vmem:[%s0] sm:$0xff]
  %v12 = vld [vmem:[%s0 + $0x8] sm:$0xff]
  %v13 = vld [vmem:[%s1] sm:$0xff]
  %v14 = vld [vmem:[%s1 + $0x8] sm:$0xff]
  %v15 = vlaneseq
  %v16 = vand.u32 %v15, 127
  %17 = vset.pattern.permute.xlu0 0
  %18 = vperm.xlu0 %17, %v13
  %v19 = vpop.permute.xlu0 %18
  %20 = vset.pattern.permute.xlu0 0
  %21 = vperm.xlu0 %20, %v14
  %v22 = vpop.permute.xlu0 %21
  %vm23 = vcmp.eq.s32.totalorder %v16, %v19
  %vm24 = vcmp.eq.s32.totalorder %v16, %v22
  %v25 = vmul.f32 %v11, 30.0
  %v26 = vmul.f32 %v12, 30.0
  %v27 = vmul.f32 %v25, 1.442695
  %v28 = vpow.pop %v27
  %v29 = vmul.f32 %v26, 1.442695
  %v30 = vpow.pop %v29
  %v31 = vsel %vm23, %v28, 0.0
  %v32 = vsel %vm24, %v30, 0.0
  %33 = vadd.xlane.f32.xlu0 %v31
  %v34 = vpop.xlane.xlu0 %33
  %35 = vadd.xlane.f32.xlu0 %v32
  %v36 = vpop.xlane.xlu0 %35
  %37 = vadd.xlane.f32.xlu0 %v28
  %v38 = vpop.xlane.xlu0 %37
  %39 = vadd.xlane.f32.xlu0 %v30
  %v40 = vpop.xlane.xlu0 %39
  %v41 = vmul.f32 %v34, 2.753645e-05
  %v42 = vmul.f32 %v36, 2.753645e-05
  %v43 = vsub.f32 %v38, %v34
  %v44 = vsub.f32 %v40, %v36
  %v45 = vadd.f32 %v41, %v43
  %v46 = vadd.f32 %v42, %v44
  %v47 = vrcp.pop %v45
  %v48 = vmul.f32 %v41, %v47
  %v49 = vrcp.pop %v46
  %v50 = vmul.f32 %v42, %v49
  %v51 = vadd.f32 %v48, 1e-20
  %v52 = vadd.f32 %v50, 1e-20
  %v53 = vlog2.pop %v51
  %v54 = vmul.f32 %v53, 0.6931472
  %v55 = vlog2.pop %v52
  %v56 = vmul.f32 %v55, 0.6931472
  %v57 = vsub.f32 0.0, %v54
  %v58 = vsub.f32 0.0, %v56
  %vm59 = vcmask 7168
  %60 = vst.msk [vmem:[%s2] sm:$0xff] %vm59, %v57
  %61 = vst.msk [vmem:[%s2 + $0x8] sm:$0xff] %vm59, %v58
  // Predicated region
  $region10: #{tpu_custom_call.1} parent=0 // pred_check
    _
  $region11: #{tpu_custom_call.1} parent=0 // pred_check_branch
    %63 = sbr.rel (0) target = $region13
  $region12: #{tpu_custom_call.1} parent=0 // pred_region
    _
  $region13: #{tpu_custom_call.1} parent=0 // pred_fallthru
    _
  // Predicated region
  $region14: #{tpu_custom_call.1} parent=0 // pred_check
    _
  $region15: #{tpu_custom_call.1} parent=0 // pred_check_branch
    %65 = sbr.rel (0) target = $region17
  $region16: #{tpu_custom_call.1} parent=0 // pred_region
    _
  $region17: #{tpu_custom_call.1} parent=0 // pred_fallthru
    _

</llo_original>
